<compile_context>
chip_gen: v6e
topology: v6e:2x2x1
jax: 0.10.0
libtpu: 0.0.40
codegen_flags: <defaults>
</compile_context>

<pallas_src>
import math

import jax
import jax.numpy as jnp
from jax.experimental import pallas as pl
from jax.experimental.pallas import tpu as pltpu


def _get_pad(size: int, multiple: int):
    new_size = math.ceil(size / multiple) * multiple
    pad_size = new_size - size
    pad_left = pad_size // 2
    pad_right = pad_size - pad_left
    return pad_left, pad_right


def _make_center_pad_kernel(pad_top: int, pad_bot: int,
                            pad_left: int, pad_right: int,
                            h: int, w: int):
    w_new = w + pad_left + pad_right

    def kernel(x_ref, o_ref):
        b = o_ref.shape[0]
        dt = o_ref.dtype
        # Zero only the border strips; the centre h x w region is stored
        # exactly once below (avoids doubling VMEM store traffic).
        if pad_top > 0:
            o_ref[:, :pad_top, :] = jnp.zeros((b, pad_top, w_new), dt)
        if pad_bot > 0:
            o_ref[:, pad_top + h:, :] = jnp.zeros((b, pad_bot, w_new), dt)
        if pad_left > 0:
            o_ref[:, pad_top:pad_top + h, :pad_left] = jnp.zeros((b, h, pad_left), dt)
        if pad_right > 0:
            o_ref[:, pad_top:pad_top + h, pad_left + w:] = jnp.zeros((b, h, pad_right), dt)
        o_ref[:, pad_top:pad_top + h, pad_left:pad_left + w] = x_ref[...]

    return kernel


def center_padding(x: jax.Array, multiple: int) -> jax.Array:
    """Pallas implementation of CenterPadding.forward for NCHW input."""
    n, c, h, w = x.shape
    pad_l_w, pad_r_w = _get_pad(w, multiple)
    pad_l_h, pad_r_h = _get_pad(h, multiple)

    # No padding needed: avoid a full read+write of the tensor entirely.
    if pad_l_w == pad_r_w == pad_l_h == pad_r_h == 0:
        return x

    h_new = h + pad_l_h + pad_r_h
    w_new = w + pad_l_w + pad_r_w

    # Fuse N*C (contiguous in NCHW) and block many slabs per grid step so
    # each step is one large contiguous DMA instead of a tiny per-(n,c) tile.
    nc = n * c
    itemsize = jnp.dtype(x.dtype).itemsize
    per_slab = (h * w + h_new * w_new) * itemsize        # in + out bytes per slab
    budget = 12 * 1024 * 1024                            # per block; ~24 MiB double-buffered
    bc = int(max(1, min(nc, budget // max(per_slab, 1))))

    x_flat = x.reshape(nc, h, w)
    kernel = _make_center_pad_kernel(pad_l_h, pad_r_h, pad_l_w, pad_r_w, h, w)

    out_bytes = nc * h_new * w_new * itemsize
    out_flat = pl.pallas_call(
        kernel,
        out_shape=jax.ShapeDtypeStruct((nc, h_new, w_new), x.dtype),
        grid=(pl.cdiv(nc, bc),),
        in_specs=[
            # Last two block dims equal the full array dims, so the (8,128)
            # tiling constraint is satisfied regardless of bc.
            pl.BlockSpec((bc, h, w), lambda i: (i, 0, 0)),
        ],
        out_specs=pl.BlockSpec((bc, h_new, w_new), lambda i: (i, 0, 0)),
        compiler_params=pltpu.CompilerParams(
            dimension_semantics=("parallel",),
            # Raise v5e's 16 MiB default; matches the v6e/v7x default and
            # stays within v7x's 64 MiB physical VMEM with headroom.
            vmem_limit_bytes=32 * 1024 * 1024,
        ),
        cost_estimate=pl.CostEstimate(
            flops=0,
            transcendentals=0,
            bytes_accessed=x.size * itemsize + out_bytes,
        ),
    )(x_flat)

    return out_flat.reshape(n, c, h_new, w_new)


def _reference(x, multiple):
    plw, prw = _get_pad(x.shape[3], multiple)
    plh, prh = _get_pad(x.shape[2], multiple)
    return jnp.pad(x, ((0, 0), (0, 0), (plh, prh), (plw, prw)))


if __name__ == "__main__":
    multiple = 14
    key = jax.random.PRNGKey(0)

    # DINOv2-style multiple (patch size 14); small NCHW input, pad both dims.
    x = jax.random.normal(key, (2, 4, 16, 16), dtype=jnp.float32)
    out = jax.block_until_ready(center_padding(x, multiple))
    ref = _reference(x, multiple)
    assert out.shape == ref.shape, (out.shape, ref.shape)
    assert jnp.allclose(out, ref), "mismatch vs reference padding (both dims)"

    # Pad only W (H already a multiple) — exercises the strip-skip paths.
    x2 = jax.random.normal(jax.random.PRNGKey(0), (1, 3, 28, 30), dtype=jnp.float32)
    out2 = jax.block_until_ready(center_padding(x2, multiple))
    ref2 = _reference(x2, multiple)
    assert out2.shape == ref2.shape, (out2.shape, ref2.shape)
    assert jnp.allclose(out2, ref2), "mismatch vs reference padding (W only)"

    # No padding needed — short-circuit path.
    x3 = jax.random.normal(jax.random.PRNGKey(0), (1, 2, 28, 28), dtype=jnp.float32)
    out3 = jax.block_until_ready(center_padding(x3, multiple))
    assert jnp.allclose(out3, x3), "short-circuit path mismatch"

    print("KERNEL_OK")
</pallas_src>

<mosaic_0001>
module attributes {stable_mosaic.version = 11 : i64} {
  func.func @kernel(%arg0: i32, %arg1: memref<8x16x16xf32, #tpu.memory_space<vmem>>, %arg2: memref<8x28x28xf32, #tpu.memory_space<vmem>>) attributes {dimension_semantics = [#tpu.dimension_semantics<parallel>], iteration_bounds = array<i64: 1>, scalar_prefetch = 0 : i64, scratch_operands = 0 : i64, tpu.core_type = #tpu.core_type<tc>, window_params = [{transform_indices = @transform_0, window_bounds = array<i64: 8, 16, 16>}, {transform_indices = @transform_1, window_bounds = array<i64: 8, 28, 28>}]} {
    %cst = arith.constant 0.000000e+00 : f32
    %0 = vector.broadcast %cst : f32 to vector<8x6x28xf32>
    %c0 = arith.constant 0 : index
    %c0_0 = arith.constant 0 : index
    %c0_1 = arith.constant 0 : index
    %1 = vector.load %arg2[%c0, %c0_0, %c0_1] : memref<8x28x28xf32, #tpu.memory_space<vmem>>, vector<8x6x28xf32>
    tpu.vector_store %arg2[%c0, %c0_0, %c0_1], %0 {strides = array<i32>} : memref<8x28x28xf32, #tpu.memory_space<vmem>>, vector<8x6x28xf32>,
    %cst_2 = arith.constant 0.000000e+00 : f32
    %2 = vector.broadcast %cst_2 : f32 to vector<8x6x28xf32>
    %c0_3 = arith.constant 0 : index
    %c22 = arith.constant 22 : index
    %c0_4 = arith.constant 0 : index
    %3 = vector.load %arg2[%c0_3, %c22, %c0_4] : memref<8x28x28xf32, #tpu.memory_space<vmem>>, vector<8x6x28xf32>
    tpu.vector_store %arg2[%c0_3, %c22, %c0_4], %2 {strides = array<i32>} : memref<8x28x28xf32, #tpu.memory_space<vmem>>, vector<8x6x28xf32>,
    %cst_5 = arith.constant 0.000000e+00 : f32
    %4 = vector.broadcast %cst_5 : f32 to vector<8x16x6xf32>
    %c0_6 = arith.constant 0 : index
    %c6 = arith.constant 6 : index
    %c0_7 = arith.constant 0 : index
    %5 = vector.load %arg2[%c0_6, %c6, %c0_7] : memref<8x28x28xf32, #tpu.memory_space<vmem>>, vector<8x16x6xf32>
    tpu.vector_store %arg2[%c0_6, %c6, %c0_7], %4 {strides = array<i32>} : memref<8x28x28xf32, #tpu.memory_space<vmem>>, vector<8x16x6xf32>,
    %cst_8 = arith.constant 0.000000e+00 : f32
    %6 = vector.broadcast %cst_8 : f32 to vector<8x16x6xf32>
    %c0_9 = arith.constant 0 : index
    %c6_10 = arith.constant 6 : index
    %c22_11 = arith.constant 22 : index
    %7 = vector.load %arg2[%c0_9, %c6_10, %c22_11] : memref<8x28x28xf32, #tpu.memory_space<vmem>>, vector<8x16x6xf32>
    tpu.vector_store %arg2[%c0_9, %c6_10, %c22_11], %6 {strides = array<i32>} : memref<8x28x28xf32, #tpu.memory_space<vmem>>, vector<8x16x6xf32>,
    %c0_12 = arith.constant 0 : index
    %c0_13 = arith.constant 0 : index
    %c0_14 = arith.constant 0 : index
    %8 = vector.load %arg1[%c0_12, %c0_13, %c0_14] : memref<8x16x16xf32, #tpu.memory_space<vmem>>, vector<8x16x16xf32>
    %c0_15 = arith.constant 0 : index
    %c6_16 = arith.constant 6 : index
    %c6_17 = arith.constant 6 : index
    %9 = vector.load %arg2[%c0_15, %c6_16, %c6_17] : memref<8x28x28xf32, #tpu.memory_space<vmem>>, vector<8x16x16xf32>
    tpu.vector_store %arg2[%c0_15, %c6_16, %c6_17], %8 {strides = array<i32>} : memref<8x28x28xf32, #tpu.memory_space<vmem>>, vector<8x16x16xf32>,
    return
  }
  func.func @transform_0(%arg0: i32) -> (i32, i32, i32) {
    %c0_i32 = arith.constant 0 : i32
    %c0_i32_0 = arith.constant 0 : i32
    %c0_i32_1 = arith.constant 0 : i32
    return %arg0, %c0_i32, %c0_i32_0 : i32, i32, i32
  }
  func.func @transform_1(%arg0: i32) -> (i32, i32, i32) {
    %c0_i32 = arith.constant 0 : i32
    %c0_i32_0 = arith.constant 0 : i32
    %c0_i32_1 = arith.constant 0 : i32
    return %arg0, %c0_i32, %c0_i32_0 : i32, i32, i32
  }
}

</mosaic_0001>

<llo_original>
// kernel: tpu_custom_call.1
$region0: #{tpu_custom_call.1}
  #allocation0 [shape = 'u32[]', space=smem, size = 0x4, offset = 0x4, fixed_abs, tag = 'smem constant byte address 0x4 - core index']
  #allocation1 [shape = 'u32[144,128]{1,0:T(1,128)}', space=vmem, size = 0x12000, scoped, tag = 'internal scratch']
  %s0 = inlined_call_operand.hbm [shape: f32[8,16,16], index: 0, kind: input, shape index: {}]
  %s1 = inlined_call_operand.vmem [shape: f32[8,28,28], index: 1, kind: output, shape index: {}]
  %s2 = sld [smem:[#allocation0]]
  $region18: #{tpu_custom_call.1} parent=0
    _
  %s4 = ssub.s32 1, %s2
  %s5 = scalar_select 0, %s4, %s2
  $region1: #{tpu_custom_call.1} parent=0
    #allocation2 [shape = 'u8[65536]{0}', space=vmem, size = 0x10000, scoped, tag = 'input window, operand 0, single buffered']
    #allocation3 [shape = 's32[1]{0}', space=sflag, size = 0x4, scoped, tag = 'scoped memory for tpu_custom_call.1']
    %6 = vsyncpa [#allocation3], 0
    // Predicated region
    $region2: #{tpu_custom_call.1} parent=1 // pred_check
      _
    $region3: #{tpu_custom_call.1} parent=1 // pred_check_branch
      %8 = sbr.rel (0) target = $region5
    $region4: #{tpu_custom_call.1} parent=1 // pred_region
      %s10 = ssub.s32 2048, 2048
      %11 = vsyncadd [#allocation3], %s10
      %s12 = sshll.u32 [#allocation2], 4
      %s13 = int_to_ptr.vmem [resolvable:$true] %s12
      %18 = dma.hbm_to_vmem [thread:$0]  %s0, 2048, %s13, [#allocation3], 128, 128, 8
    $region5: #{tpu_custom_call.1} parent=1 // pred_fallthru
      _
    // Predicated region
    $region6: #{tpu_custom_call.1} parent=1 // pred_check
      _
    $region7: #{tpu_custom_call.1} parent=1 // pred_check_branch
      %20 = sbr.rel (0) target = $region9
    $region8: #{tpu_custom_call.1} parent=1 // pred_region
      %21 = dma.done [#allocation3], 2048
    $region9: #{tpu_custom_call.1} parent=1 // pred_fallthru
      _
    %vm22 = vcmask 226304
    %23 = vst.msk [vmem:[%s1] sm:$0x3f] %vm22, 0.0
    %24 = vst.msk [vmem:[%s1 + $0x20] sm:$0x3f] %vm22, 0.0
    %25 = vst.msk [vmem:[%s1 + $0x40] sm:$0x3f] %vm22, 0.0
    %26 = vst.msk [vmem:[%s1 + $0x60] sm:$0x3f] %vm22, 0.0
    %27 = vst.msk [vmem:[%s1 + $0x80] sm:$0x3f] %vm22, 0.0
    %28 = vst.msk [vmem:[%s1 + $0xa0] sm:$0x3f] %vm22, 0.0
    %29 = vst.msk [vmem:[%s1 + $0xc0] sm:$0x3f] %vm22, 0.0
    %30 = vst.msk [vmem:[%s1 + $0xe0] sm:$0x3f] %vm22, 0.0
    %31 = vst.msk [vmem:[%s1 + $0x16] sm:$0x3f] %vm22, 0.0
    %32 = vst.msk [vmem:[%s1 + $0x36] sm:$0x3f] %vm22, 0.0
    %33 = vst.msk [vmem:[%s1 + $0x56] sm:$0x3f] %vm22, 0.0
    %34 = vst.msk [vmem:[%s1 + $0x76] sm:$0x3f] %vm22, 0.0
    %35 = vst.msk [vmem:[%s1 + $0x96] sm:$0x3f] %vm22, 0.0
    %36 = vst.msk [vmem:[%s1 + $0xb6] sm:$0x3f] %vm22, 0.0
    %37 = vst.msk [vmem:[%s1 + $0xd6] sm:$0x3f] %vm22, 0.0
    %38 = vst.msk [vmem:[%s1 + $0xf6] sm:$0x3f] %vm22, 0.0
    %vm39 = vcmask 48128
    %40 = vst.msk [vmem:[%s1 + $0x6] sm:$0xff] %vm39, 0.0
    %41 = vst.msk [vmem:[%s1 + $0xe] sm:$0xff] %vm39, 0.0
    %42 = vst.msk [vmem:[%s1 + $0x26] sm:$0xff] %vm39, 0.0
    %43 = vst.msk [vmem:[%s1 + $0x2e] sm:$0xff] %vm39, 0.0
    %44 = vst.msk [vmem:[%s1 + $0x46] sm:$0xff] %vm39, 0.0
    %45 = vst.msk [vmem:[%s1 + $0x4e] sm:$0xff] %vm39, 0.0
    %46 = vst.msk [vmem:[%s1 + $0x66] sm:$0xff] %vm39, 0.0
    %47 = vst.msk [vmem:[%s1 + $0x6e] sm:$0xff] %vm39, 0.0
    %48 = vst.msk [vmem:[%s1 + $0x86] sm:$0xff] %vm39, 0.0
    %49 = vst.msk [vmem:[%s1 + $0x8e] sm:$0xff] %vm39, 0.0
    %50 = vst.msk [vmem:[%s1 + $0xa6] sm:$0xff] %vm39, 0.0
    %51 = vst.msk [vmem:[%s1 + $0xae] sm:$0xff] %vm39, 0.0
    %52 = vst.msk [vmem:[%s1 + $0xc6] sm:$0xff] %vm39, 0.0
    %53 = vst.msk [vmem:[%s1 + $0xce] sm:$0xff] %vm39, 0.0
    %54 = vst.msk [vmem:[%s1 + $0xe6] sm:$0xff] %vm39, 0.0
    %55 = vst.msk [vmem:[%s1 + $0xee] sm:$0xff] %vm39, 0.0
    %vm56 = vcmask 228528
    %57 = vst.msk [vmem:[%s1 + $0x6] sm:$0xff] %vm56, 0.0
    %58 = vst.msk [vmem:[%s1 + $0xe] sm:$0xff] %vm56, 0.0
    %59 = vst.msk [vmem:[%s1 + $0x26] sm:$0xff] %vm56, 0.0
    %60 = vst.msk [vmem:[%s1 + $0x2e] sm:$0xff] %vm56, 0.0
    %61 = vst.msk [vmem:[%s1 + $0x46] sm:$0xff] %vm56, 0.0
    %62 = vst.msk [vmem:[%s1 + $0x4e] sm:$0xff] %vm56, 0.0
    %63 = vst.msk [vmem:[%s1 + $0x66] sm:$0xff] %vm56, 0.0
    %64 = vst.msk [vmem:[%s1 + $0x6e] sm:$0xff] %vm56, 0.0
    %65 = vst.msk [vmem:[%s1 + $0x86] sm:$0xff] %vm56, 0.0
    %66 = vst.msk [vmem:[%s1 + $0x8e] sm:$0xff] %vm56, 0.0
    %67 = vst.msk [vmem:[%s1 + $0xa6] sm:$0xff] %vm56, 0.0
    %68 = vst.msk [vmem:[%s1 + $0xae] sm:$0xff] %vm56, 0.0
    %69 = vst.msk [vmem:[%s1 + $0xc6] sm:$0xff] %vm56, 0.0
    %70 = vst.msk [vmem:[%s1 + $0xce] sm:$0xff] %vm56, 0.0
    %71 = vst.msk [vmem:[%s1 + $0xe6] sm:$0xff] %vm56, 0.0
    %72 = vst.msk [vmem:[%s1 + $0xee] sm:$0xff] %vm56, 0.0
    %v73 = vld [vmem:[#allocation2] sm:$0xff]
    %v74 = vld [vmem:[#allocation2 + $0x8] sm:$0xff]
    %v75 = vld [vmem:[#allocation2 + $0x10] sm:$0xff]
    %v76 = vld [vmem:[#allocation2 + $0x18] sm:$0xff]
    %v77 = vld [vmem:[#allocation2 + $0x20] sm:$0xff]
    %v78 = vld [vmem:[#allocation2 + $0x28] sm:$0xff]
    %v79 = vld [vmem:[#allocation2 + $0x30] sm:$0xff]
    %v80 = vld [vmem:[#allocation2 + $0x38] sm:$0xff]
    %v81 = vld [vmem:[#allocation2 + $0x40] sm:$0xff]
    %v82 = vld [vmem:[#allocation2 + $0x48] sm:$0xff]
    %v83 = vld [vmem:[#allocation2 + $0x50] sm:$0xff]
    %v84 = vld [vmem:[#allocation2 + $0x58] sm:$0xff]
    %v85 = vld [vmem:[#allocation2 + $0x60] sm:$0xff]
    %v86 = vld [vmem:[#allocation2 + $0x68] sm:$0xff]
    %v87 = vld [vmem:[#allocation2 + $0x70] sm:$0xff]
    %v88 = vld [vmem:[#allocation2 + $0x78] sm:$0xff]
    %105 = vrot.lane.b32.xlu0 %v73, 6
    %v106 = vpop.permute.xlu0 %105
    %107 = vrot.lane.b32.xlu0 %v74, 6
    %v108 = vpop.permute.xlu0 %107
    %109 = vrot.lane.b32.xlu0 %v75, 6
    %v110 = vpop.permute.xlu0 %109
    %111 = vrot.lane.b32.xlu0 %v76, 6
    %v112 = vpop.permute.xlu0 %111
    %113 = vrot.lane.b32.xlu0 %v77, 6
    %v114 = vpop.permute.xlu0 %113
    %115 = vrot.lane.b32.xlu0 %v78, 6
    %v116 = vpop.permute.xlu0 %115
    %117 = vrot.lane.b32.xlu0 %v79, 6
    %v118 = vpop.permute.xlu0 %117
    %119 = vrot.lane.b32.xlu0 %v80, 6
    %v120 = vpop.permute.xlu0 %119
    %121 = vrot.lane.b32.xlu0 %v81, 6
    %v122 = vpop.permute.xlu0 %121
    %123 = vrot.lane.b32.xlu0 %v82, 6
    %v124 = vpop.permute.xlu0 %123
    %125 = vrot.lane.b32.xlu0 %v83, 6
    %v126 = vpop.permute.xlu0 %125
    %127 = vrot.lane.b32.xlu0 %v84, 6
    %v128 = vpop.permute.xlu0 %127
    %129 = vrot.lane.b32.xlu0 %v85, 6
    %v130 = vpop.permute.xlu0 %129
    %131 = vrot.lane.b32.xlu0 %v86, 6
    %v132 = vpop.permute.xlu0 %131
    %133 = vrot.lane.b32.xlu0 %v87, 6
    %v134 = vpop.permute.xlu0 %133
    %135 = vrot.lane.b32.xlu0 %v88, 6
    %v136 = vpop.permute.xlu0 %135
    %vm153 = vcmask 179248
    %154 = vst.msk [vmem:[%s1 + $0x6] sm:$0xff] %vm153, %v106
    %155 = vst.msk [vmem:[%s1 + $0xe] sm:$0xff] %vm153, %v108
    %156 = vst.msk [vmem:[%s1 + $0x26] sm:$0xff] %vm153, %v110
    %157 = vst.msk [vmem:[%s1 + $0x2e] sm:$0xff] %vm153, %v112
    %158 = vst.msk [vmem:[%s1 + $0x46] sm:$0xff] %vm153, %v114
    %159 = vst.msk [vmem:[%s1 + $0x4e] sm:$0xff] %vm153, %v116
    %160 = vst.msk [vmem:[%s1 + $0x66] sm:$0xff] %vm153, %v118
    %161 = vst.msk [vmem:[%s1 + $0x6e] sm:$0xff] %vm153, %v120
    %162 = vst.msk [vmem:[%s1 + $0x86] sm:$0xff] %vm153, %v122
    %163 = vst.msk [vmem:[%s1 + $0x8e] sm:$0xff] %vm153, %v124
    %164 = vst.msk [vmem:[%s1 + $0xa6] sm:$0xff] %vm153, %v126
    %165 = vst.msk [vmem:[%s1 + $0xae] sm:$0xff] %vm153, %v128
    %166 = vst.msk [vmem:[%s1 + $0xc6] sm:$0xff] %vm153, %v130
    %167 = vst.msk [vmem:[%s1 + $0xce] sm:$0xff] %vm153, %v132
    %168 = vst.msk [vmem:[%s1 + $0xe6] sm:$0xff] %vm153, %v134
    %169 = vst.msk [vmem:[%s1 + $0xee] sm:$0xff] %vm153, %v136
    // Predicated region
    $region10: #{tpu_custom_call.1} parent=1 // pred_check
      _
    $region11: #{tpu_custom_call.1} parent=1 // pred_check_branch
      %171 = sbr.rel (0) target = $region13
    $region12: #{tpu_custom_call.1} parent=1 // pred_region
      _
    $region13: #{tpu_custom_call.1} parent=1 // pred_fallthru
      _
    // Predicated region
    $region14: #{tpu_custom_call.1} parent=1 // pred_check
      _
    $region15: #{tpu_custom_call.1} parent=1 // pred_check_branch
      %173 = sbr.rel (0) target = $region17
    $region16: #{tpu_custom_call.1} parent=1 // pred_region
      _
    $region17: #{tpu_custom_call.1} parent=1 // pred_fallthru
      _
    %174 = vsyncpa [#allocation3], 1

</llo_original>
